<compile_context>
chip_gen: v5e
topology: v5e:2x2
jax: 0.10.0
libtpu: 0.0.40
codegen_flags: <defaults>
</compile_context>

<pallas_src>
import functools

import jax
import jax.numpy as jnp
from jax import lax
from jax.experimental import pallas as pl
from jax.experimental.pallas import tpu as pltpu


def _detector_kernel(q_per_batch, c_r, ncls, eps,
                     x_ref, wp_ref, g_ref, wf1_ref, w2_ref, wf3_ref,
                     bias_ref, out_ref):
    # Packed per-channel params (rows of bias_ref):
    #   0: proj bias | 1: GN gamma | 2: GN beta
    #   3: fused MLP layer-1 bias (cls|box) | 4: layer-2 bias (cls|box)
    #   5: layer-3 bias laid out over the padded output lanes
    out_pad = out_ref.shape[-1]
    bias = bias_ref[...]                                  # [6, bias_w] f32
    proj_b = bias[0:1, :c_r]
    gamma = bias[1:2, :c_r]
    beta = bias[2:3, :c_r]
    b1 = bias[3:4, :2 * c_r]
    bc2 = bias[4:5, :c_r]
    bb2 = bias[4:5, c_r:2 * c_r]
    b3 = bias[5:6, :out_pad]

    x = x_ref[...]                                        # [rows, C_in_pad] (mmd)
    mmd = wp_ref.dtype                                    # f32 or bf16 operands

    # --- input_proj[0]: Conv2d(C_in, C_r, 1) == per-token linear over all rows
    y = jnp.dot(x, wp_ref[...],
                preferred_element_type=jnp.float32) + proj_b      # [rows, C_r] f32

    # --- input_proj[1]: GroupNorm(32, C_r); stats per batch element over
    # (group channels x Q tokens).  One fused sublane reduction over Q for
    # (sum, sum of squares); 1/(group_size*Q) is pre-folded into G.  All f32.
    bb = y.shape[0] // q_per_batch
    y3 = y.reshape(bb, q_per_batch, c_r)
    s = jnp.sum(jnp.concatenate([y3, y3 * y3], axis=-1), axis=1)  # [bb, 2C_r]
    g = g_ref[...]                                                # [C_r, C_r] f32
    mean = jnp.dot(s[:, :c_r], g, preferred_element_type=jnp.float32)  # [bb, C_r]
    ex2 = jnp.dot(s[:, c_r:], g, preferred_element_type=jnp.float32)
    # single-pass variance (E[x^2] - E[x]^2); acceptable because stats are f32.
    var = ex2 - mean * mean
    inv = lax.rsqrt(var + eps)
    scale = inv * gamma                                   # [bb, C_r]
    shift = beta - mean * scale
    h = (y3 * scale[:, None, :] + shift[:, None, :]).reshape(bb * q_per_batch, c_r)

    # --- class|bbox MLPs.
    # layer-1: fused dense [C_r, 2C_r]
    h1 = jnp.maximum(
        jnp.dot(h.astype(mmd), wf1_ref[...],
                preferred_element_type=jnp.float32) + b1, 0.0)    # [rows, 2C_r]
    # layer-2: two DENSE [C_r, C_r] matmuls (lane split at C_r is a clean tile
    # boundary) -- no zero-padded block-diagonal work.
    w2 = w2_ref[...]                                              # [C_r, 2C_r]
    hc = jnp.maximum(
        jnp.dot(h1[:, :c_r].astype(mmd), w2[:, :c_r],
                preferred_element_type=jnp.float32) + bc2, 0.0)   # [rows, C_r]
    hb = jnp.maximum(
        jnp.dot(h1[:, c_r:].astype(mmd), w2[:, c_r:],
                preferred_element_type=jnp.float32) + bb2, 0.0)   # [rows, C_r]
    # layer-3: two [C_r, out_pad] matmuls summed (avoids a lane-concat of hc|hb)
    w3 = wf3_ref[...]                                             # [2C_r, out_pad]
    out = (jnp.dot(hc.astype(mmd), w3[:c_r, :],
                   preferred_element_type=jnp.float32)
           + jnp.dot(hb.astype(mmd), w3[c_r:, :],
                     preferred_element_type=jnp.float32) + b3)    # [rows, out_pad]

    # sigmoid only on the bbox (and harmless pad) lanes; one lane-dense store.
    col = lax.broadcasted_iota(jnp.int32, out.shape, 1)
    out_ref[...] = jnp.where(col < ncls, out, jax.nn.sigmoid(out))


def _pick_batch_block(B, Q, c_in_pad, itemsize, target_bytes=8 << 20):
    """>=2 grid steps (v7x megacore) and an x block capped at ~8 MiB (v7x VMEM)."""
    if B == 1:
        return 1
    bb = B // 2
    while B % bb:
        bb -= 1
    while bb > 1 and bb * Q * c_in_pad * itemsize > target_bytes:
        bb -= 1
        while B % bb:
            bb -= 1
    return max(bb, 1)


def detector_forward(det, params, *, num_groups=32, eps=1e-5,
                     batch_block=None, matmul_dtype=jnp.bfloat16,
                     channels_last=False):
    """det: [B, C_in, Q] (or [B, Q, C_in] if channels_last) float32
    -> dict(pred_logits [B, Q, ncls+1], pred_boxes [B, Q, 4])."""
    if channels_last:
        B, Q, C_in = det.shape
        x_bqc = det
    else:
        B, C_in, Q = det.shape
        # TODO(synk): have the backbone emit channel-last [B, Q, C] det tokens
        # to avoid this extra HBM transpose pass before the kernel.
        x_bqc = jnp.transpose(det, (0, 2, 1))

    C_r = params["proj_w"].shape[0]
    ncls = params["c3_w"].shape[0]                        # num_classes + 1
    assert C_r % num_groups == 0
    gs = C_r // num_groups
    out_w = ncls + 4
    out_pad = max(128, ((out_w + 127) // 128) * 128)      # lane-dense output
    c_in_pad = ((C_in + 127) // 128) * 128                # lane-dense input
    bias_w = max(2 * C_r, out_pad)

    mmd = jnp.dtype(matmul_dtype)

    if batch_block is None:
        batch_block = _pick_batch_block(B, Q, c_in_pad, mmd.itemsize)
    assert B % batch_block == 0
    rows = batch_block * Q
    # TODO(synk): pad Q (e.g. the real ViDT Q=100) to a sublane multiple
    # (16 for bf16 operands) instead of asserting.
    assert rows % 8 == 0

    x = x_bqc.reshape(B * Q, C_in)
    if c_in_pad != C_in:
        x = jnp.pad(x, ((0, 0), (0, c_in_pad - C_in)))
    x = x.astype(mmd)

    def wT(name):
        return jnp.asarray(params[name], jnp.float32).T

    # projection weight, zero-padded over the padded input channels
    wp = jnp.zeros((c_in_pad, C_r), jnp.float32).at[:C_in, :].set(wT("proj_w"))
    wp = wp.astype(mmd)

    # Group-membership matrix with 1/(group_size * Q) folded in (f32 stats path).
    ch = jnp.arange(C_r)
    G = ((ch[:, None] // gs) == (ch[None, :] // gs)).astype(jnp.float32)
    G = G / float(gs * Q)                                          # [C_r, C_r]

    # MLP weights: fused dense layer-1, two dense layer-2 halves, layer-3 over
    # the padded output lanes (class logits in [:ncls], bbox in [ncls:ncls+4]).
    wf1 = jnp.concatenate([wT("c1_w"), wT("b1_w")], axis=1).astype(mmd)   # [C_r, 2C_r]
    w2 = jnp.concatenate([wT("c2_w"), wT("b2_w")], axis=1).astype(mmd)    # [C_r, 2C_r]
    wf3 = jnp.zeros((2 * C_r, out_pad), jnp.float32)
    wf3 = wf3.at[:C_r, :ncls].set(wT("c3_w"))
    wf3 = wf3.at[C_r:, ncls:ncls + 4].set(wT("b3_w"))
    wf3 = wf3.astype(mmd)

    # All per-channel vectors packed into one [6, bias_w] f32 slab.
    def padw(v):
        v = jnp.asarray(v, jnp.float32).reshape(-1)
        return jnp.pad(v, (0, bias_w - v.shape[0]))

    biases = jnp.stack([
        padw(params["proj_b"]),
        padw(params["gn_gamma"]),
        padw(params["gn_beta"]),
        padw(jnp.concatenate([params["c1_b"], params["b1_b"]])),
        padw(jnp.concatenate([params["c2_b"], params["b2_b"]])),
        padw(jnp.concatenate([jnp.asarray(params["c3_b"]),
                              jnp.asarray(params["b3_b"])])),
    ], axis=0)                                                     # [6, bias_w]

    grid = (B // batch_block,)
    full2d = lambda a: pl.BlockSpec(a.shape, lambda i: (0, 0))

    kernel = functools.partial(_detector_kernel, Q, C_r, ncls, float(eps))

    # cost model (MACs*2): proj + layer1 + 2x layer2 + 2x layer3 + GN mixing
    flops = (2 * B * Q * (c_in_pad * C_r + 2 * C_r * C_r + 2 * C_r * C_r
                          + 2 * C_r * out_pad)
             + 4 * B * C_r * C_r)
    bytes_accessed = int(
        x.size * x.dtype.itemsize + 4 * B * Q * out_pad
        + sum(int(a.size) * a.dtype.itemsize
              for a in (wp, G, wf1, w2, wf3, biases)))

    # VMEM budget: double-buffered x/out blocks + (conservatively doubled)
    # resident weights + f32 intermediates; keep headroom, cap under v7x 64 MiB.
    x_blk = rows * c_in_pad * mmd.itemsize
    out_blk = rows * out_pad * 4
    w_bytes = sum(int(a.size) * a.dtype.itemsize
                  for a in (wp, G, wf1, w2, wf3, biases))
    inter = rows * (C_r + 2 * C_r + 2 * C_r + 2 * C_r + out_pad) * 4
    vmem_est = 2 * (x_blk + out_blk) + 2 * w_bytes + inter
    vmem_limit = int(min(56 << 20, max(20 << 20, int(1.5 * vmem_est) + (8 << 20))))

    out = pl.pallas_call(
        kernel,
        out_shape=jax.ShapeDtypeStruct((B * Q, out_pad), jnp.float32),
        grid_spec=pltpu.PrefetchScalarGridSpec(
            num_scalar_prefetch=0,
            grid=grid,
            in_specs=[pl.BlockSpec((rows, c_in_pad), lambda i: (i, 0)),
                      full2d(wp), full2d(G), full2d(wf1), full2d(w2),
                      full2d(wf3), full2d(biases)],
            out_specs=pl.BlockSpec((rows, out_pad), lambda i: (i, 0)),
        ),
        compiler_params=pltpu.CompilerParams(
            dimension_semantics=("parallel",),
            vmem_limit_bytes=vmem_limit),
        cost_estimate=pl.CostEstimate(
            flops=flops,
            transcendentals=B * Q * out_pad + B * C_r,
            bytes_accessed=bytes_accessed),
    )(x, wp, G, wf1, w2, wf3, biases)

    out = out.reshape(B, Q, out_pad)
    return {"pred_logits": out[..., :ncls],
            "pred_boxes": out[..., ncls:ncls + 4]}


# ---------------------------------------------------------------------------
# Deterministic parameter construction (matches the module's __init__ shapes).
# ---------------------------------------------------------------------------
def make_params(key, c_in, c_r, num_classes):
    ks = jax.random.split(key, 8)

    def xavier(k, shape):
        fan_out, fan_in = shape
        bound = (6.0 / (fan_in + fan_out)) ** 0.5
        return jax.random.uniform(k, shape, jnp.float32, -bound, bound)

    ncls = num_classes + 1
    return {
        # input_proj: Conv2d(c_in, c_r, 1) (xavier_uniform weight, zero bias)
        "proj_w": xavier(ks[0], (c_r, c_in)),
        "proj_b": jnp.zeros((c_r,), jnp.float32),
        # GroupNorm(32, c_r) default affine init
        "gn_gamma": jnp.ones((c_r,), jnp.float32),
        "gn_beta": jnp.zeros((c_r,), jnp.float32),
        # class_embed = MLP(c_r, c_r, num_classes+1, 3)
        "c1_w": xavier(ks[1], (c_r, c_r)), "c1_b": jnp.full((c_r,), 0.01, jnp.float32),
        "c2_w": xavier(ks[2], (c_r, c_r)), "c2_b": jnp.full((c_r,), -0.01, jnp.float32),
        "c3_w": xavier(ks[3], (ncls, c_r)), "c3_b": jnp.zeros((ncls,), jnp.float32),
        # bbox_embed = MLP(c_r, c_r, 4, 3)
        "b1_w": xavier(ks[4], (c_r, c_r)), "b1_b": jnp.full((c_r,), 0.02, jnp.float32),
        "b2_w": xavier(ks[5], (c_r, c_r)), "b2_b": jnp.full((c_r,), -0.02, jnp.float32),
        "b3_w": xavier(ks[6], (4, c_r)), "b3_b": jnp.zeros((4,), jnp.float32),
    }


def reference_forward(det, params, *, num_groups=32, eps=1e-5):
    """Pure-JAX reference replicating the PyTorch forward semantics."""
    x = jnp.transpose(det, (0, 2, 1))                              # [B, Q, C_in]
    y = jnp.einsum("bqc,dc->bqd", x, params["proj_w"]) + params["proj_b"]
    B, Q, C_r = y.shape
    gs = C_r // num_groups
    yg = y.reshape(B, Q, num_groups, gs)
    mean = yg.mean(axis=(1, 3), keepdims=True)
    var = yg.var(axis=(1, 3), keepdims=True)
    y = ((yg - mean) / jnp.sqrt(var + eps)).reshape(B, Q, C_r)
    y = y * params["gn_gamma"] + params["gn_beta"]

    def mlp(h, pre):
        h = jax.nn.relu(h @ params[pre + "1_w"].T + params[pre + "1_b"])
        h = jax.nn.relu(h @ params[pre + "2_w"].T + params[pre + "2_b"])
        return h @ params[pre + "3_w"].T + params[pre + "3_b"]

    return {"pred_logits": mlp(y, "c"),
            "pred_boxes": jax.nn.sigmoid(mlp(y, "b"))}


if __name__ == "__main__":
    B, C_IN, Q = 2, 64, 16             # batch, backbone channels, num det tokens
    REDUCED_DIM, NUM_CLASSES = 128, 7  # reduced_dim must be divisible by 32 (GroupNorm)

    key = jax.random.PRNGKey(0)
    k_det, k_par = jax.random.split(key)
    det = jax.random.normal(k_det, (B, C_IN, Q), jnp.float32)   # backbone [DET] tokens
    params = make_params(k_par, C_IN, REDUCED_DIM, NUM_CLASSES)

    ref = reference_forward(det, params)

    # Default path: bf16 matmul operands (MXU-native on v5e/v6e/v7x),
    # f32 GroupNorm statistics and accumulation; grid=(2,) for megacore.
    out_bf16 = detector_forward(det, params)
    jax.block_until_ready(out_bf16)
    assert out_bf16["pred_logits"].shape == (B, Q, NUM_CLASSES + 1)
    assert out_bf16["pred_boxes"].shape == (B, Q, 4)
    assert jnp.allclose(out_bf16["pred_logits"], ref["pred_logits"], atol=5e-2, rtol=5e-2)
    assert jnp.allclose(out_bf16["pred_boxes"], ref["pred_boxes"], atol=5e-2, rtol=5e-2)

    # f32 matmul operands: tight check against the pure-JAX reference.
    out_f32 = detector_forward(det, params, matmul_dtype=jnp.float32)
    jax.block_until_ready(out_f32)
    assert jnp.allclose(out_f32["pred_logits"], ref["pred_logits"], atol=2e-4, rtol=2e-4)
    assert jnp.allclose(out_f32["pred_boxes"], ref["pred_boxes"], atol=2e-4, rtol=2e-4)

    print("KERNEL_OK")
</pallas_src>

<mosaic_0001>
module attributes {stable_mosaic.version = 11 : i64} {
  func.func @_detector_kernel(%arg0: i32, %arg1: memref<16x128xbf16, #tpu.memory_space<vmem>>, %arg2: memref<128x128xbf16, #tpu.memory_space<vmem>>, %arg3: memref<128x128xf32, #tpu.memory_space<vmem>>, %arg4: memref<128x256xbf16, #tpu.memory_space<vmem>>, %arg5: memref<128x256xbf16, #tpu.memory_space<vmem>>, %arg6: memref<256x128xbf16, #tpu.memory_space<vmem>>, %arg7: memref<6x256xf32, #tpu.memory_space<vmem>>, %arg8: memref<16x128xf32, #tpu.memory_space<vmem>>) attributes {dimension_semantics = [#tpu.dimension_semantics<parallel>], iteration_bounds = array<i64: 2>, scalar_prefetch = 0 : i64, scratch_operands = 0 : i64, tpu.core_type = #tpu.core_type<tc>, window_params = [{transform_indices = @transform_0, window_bounds = array<i64: 16, 128>}, {pipeline_mode = #tpu.pipeline_mode<synchronous>, transform_indices = @transform_1, window_bounds = array<i64: 128, 128>}, {pipeline_mode = #tpu.pipeline_mode<synchronous>, transform_indices = @transform_2, window_bounds = array<i64: 128, 128>}, {pipeline_mode = #tpu.pipeline_mode<synchronous>, transform_indices = @transform_3, window_bounds = array<i64: 128, 256>}, {pipeline_mode = #tpu.pipeline_mode<synchronous>, transform_indices = @transform_4, window_bounds = array<i64: 128, 256>}, {pipeline_mode = #tpu.pipeline_mode<synchronous>, transform_indices = @transform_5, window_bounds = array<i64: 256, 128>}, {pipeline_mode = #tpu.pipeline_mode<synchronous>, transform_indices = @transform_6, window_bounds = array<i64: 6, 256>}, {transform_indices = @transform_7, window_bounds = array<i64: 16, 128>}]} {
    %c0 = arith.constant 0 : index
    %c0_0 = arith.constant 0 : index
    %0 = vector.load %arg7[%c0, %c0_0] : memref<6x256xf32, #tpu.memory_space<vmem>>, vector<6x256xf32>
    %1 = vector.extract_strided_slice %0 {offsets = [0, 0], sizes = [1, 128], strides = [1, 1]} : vector<6x256xf32> to vector<1x128xf32>
    %2 = vector.extract_strided_slice %0 {offsets = [1, 0], sizes = [1, 128], strides = [1, 1]} : vector<6x256xf32> to vector<1x128xf32>
    %3 = vector.extract_strided_slice %0 {offsets = [2, 0], sizes = [1, 128], strides = [1, 1]} : vector<6x256xf32> to vector<1x128xf32>
    %4 = vector.extract_strided_slice %0 {offsets = [3, 0], sizes = [1, 256], strides = [1, 1]} : vector<6x256xf32> to vector<1x256xf32>
    %5 = vector.extract_strided_slice %0 {offsets = [4, 0], sizes = [1, 128], strides = [1, 1]} : vector<6x256xf32> to vector<1x128xf32>
    %6 = vector.extract_strided_slice %0 {offsets = [4, 128], sizes = [1, 128], strides = [1, 1]} : vector<6x256xf32> to vector<1x128xf32>
    %7 = vector.extract_strided_slice %0 {offsets = [5, 0], sizes = [1, 128], strides = [1, 1]} : vector<6x256xf32> to vector<1x128xf32>
    %c0_1 = arith.constant 0 : index
    %c0_2 = arith.constant 0 : index
    %8 = vector.load %arg1[%c0_1, %c0_2] : memref<16x128xbf16, #tpu.memory_space<vmem>>, vector<16x128xbf16>
    %c0_3 = arith.constant 0 : index
    %c0_4 = arith.constant 0 : index
    %9 = vector.load %arg2[%c0_3, %c0_4] : memref<128x128xbf16, #tpu.memory_space<vmem>>, vector<128x128xbf16>
    %cst = arith.constant dense<0.000000e+00> : vector<16x128xf32>
    %10 = tpu.matmul %8, %9, %cst {dimension_numbers = #tpu.dot_dimension_numbers<[1], [0], [0], [1], [0, 0, 1, 1], [], []>} : vector<16x128xbf16>, vector<128x128xbf16>, vector<16x128xf32> -> vector<16x128xf32>
    %11 = vector.broadcast %1 : vector<1x128xf32> to vector<16x128xf32>
    %12 = arith.addf %10, %11 : vector<16x128xf32>
    %13 = vector.shape_cast %12 : vector<16x128xf32> to vector<1x16x128xf32>
    %14 = arith.mulf %13, %13 : vector<1x16x128xf32>
    %15 = tpu.concatenate %13, %14 in 2 : vector<1x16x128xf32>, vector<1x16x128xf32> -> vector<1x16x256xf32>
    %cst_5 = arith.constant dense<0.000000e+00> : vector<1x256xf32>
    %16 = vector.multi_reduction <add>, %15, %cst_5 [1] : vector<1x16x256xf32> to vector<1x256xf32>
    %c0_6 = arith.constant 0 : index
    %c0_7 = arith.constant 0 : index
    %17 = vector.load %arg3[%c0_6, %c0_7] : memref<128x128xf32, #tpu.memory_space<vmem>>, vector<128x128xf32>
    %18 = vector.extract_strided_slice %16 {offsets = [0, 0], sizes = [1, 128], strides = [1, 1]} : vector<1x256xf32> to vector<1x128xf32>
    %cst_8 = arith.constant dense<0.000000e+00> : vector<1x128xf32>
    %19 = tpu.matmul %18, %17, %cst_8 {dimension_numbers = #tpu.dot_dimension_numbers<[1], [0], [0], [1], [0, 0, 1, 1], [], []>} : vector<1x128xf32>, vector<128x128xf32>, vector<1x128xf32> -> vector<1x128xf32>
    %20 = vector.extract_strided_slice %16 {offsets = [0, 128], sizes = [1, 128], strides = [1, 1]} : vector<1x256xf32> to vector<1x128xf32>
    %cst_9 = arith.constant dense<0.000000e+00> : vector<1x128xf32>
    %21 = tpu.matmul %20, %17, %cst_9 {dimension_numbers = #tpu.dot_dimension_numbers<[1], [0], [0], [1], [0, 0, 1, 1], [], []>} : vector<1x128xf32>, vector<128x128xf32>, vector<1x128xf32> -> vector<1x128xf32>
    %22 = arith.mulf %19, %19 : vector<1x128xf32>
    %23 = arith.subf %21, %22 : vector<1x128xf32>
    %cst_10 = arith.constant 9.99999974E-6 : f32
    %24 = vector.broadcast %cst_10 : f32 to vector<1x128xf32>
    %25 = arith.addf %23, %24 : vector<1x128xf32>
    %26 = math.rsqrt %25 : vector<1x128xf32>
    %27 = arith.mulf %26, %2 : vector<1x128xf32>
    %28 = arith.mulf %19, %27 : vector<1x128xf32>
    %29 = arith.subf %3, %28 : vector<1x128xf32>
    %30 = vector.shape_cast %27 : vector<1x128xf32> to vector<1x1x128xf32>
    %31 = vector.broadcast %30 : vector<1x1x128xf32> to vector<1x16x128xf32>
    %32 = arith.mulf %13, %31 : vector<1x16x128xf32>
    %33 = vector.shape_cast %29 : vector<1x128xf32> to vector<1x1x128xf32>
    %34 = vector.broadcast %33 : vector<1x1x128xf32> to vector<1x16x128xf32>
    %35 = arith.addf %32, %34 : vector<1x16x128xf32>
    %36 = vector.shape_cast %35 : vector<1x16x128xf32> to vector<16x128xf32>
    %37 = arith.truncf %36 : vector<16x128xf32> to vector<16x128xbf16>
    %c0_11 = arith.constant 0 : index
    %c0_12 = arith.constant 0 : index
    %38 = vector.load %arg4[%c0_11, %c0_12] : memref<128x256xbf16, #tpu.memory_space<vmem>>, vector<128x256xbf16>
    %cst_13 = arith.constant dense<0.000000e+00> : vector<16x256xf32>
    %39 = tpu.matmul %37, %38, %cst_13 {dimension_numbers = #tpu.dot_dimension_numbers<[1], [0], [0], [1], [0, 0, 1, 1], [], []>} : vector<16x128xbf16>, vector<128x256xbf16>, vector<16x256xf32> -> vector<16x256xf32>
    %40 = vector.broadcast %4 : vector<1x256xf32> to vector<16x256xf32>
    %41 = arith.addf %39, %40 : vector<16x256xf32>
    %cst_14 = arith.constant 0.000000e+00 : f32
    %42 = vector.broadcast %cst_14 : f32 to vector<16x256xf32>
    %43 = arith.maximumf %41, %42 : vector<16x256xf32>
    %c0_15 = arith.constant 0 : index
    %c0_16 = arith.constant 0 : index
    %44 = vector.load %arg5[%c0_15, %c0_16] : memref<128x256xbf16, #tpu.memory_space<vmem>>, vector<128x256xbf16>
    %45 = vector.extract_strided_slice %43 {offsets = [0, 0], sizes = [16, 128], strides = [1, 1]} : vector<16x256xf32> to vector<16x128xf32>
    %46 = arith.truncf %45 : vector<16x128xf32> to vector<16x128xbf16>
    %47 = vector.extract_strided_slice %44 {offsets = [0, 0], sizes = [128, 128], strides = [1, 1]} : vector<128x256xbf16> to vector<128x128xbf16>
    %cst_17 = arith.constant dense<0.000000e+00> : vector<16x128xf32>
    %48 = tpu.matmul %46, %47, %cst_17 {dimension_numbers = #tpu.dot_dimension_numbers<[1], [0], [0], [1], [0, 0, 1, 1], [], []>} : vector<16x128xbf16>, vector<128x128xbf16>, vector<16x128xf32> -> vector<16x128xf32>
    %49 = vector.broadcast %5 : vector<1x128xf32> to vector<16x128xf32>
    %50 = arith.addf %48, %49 : vector<16x128xf32>
    %cst_18 = arith.constant 0.000000e+00 : f32
    %51 = vector.broadcast %cst_18 : f32 to vector<16x128xf32>
    %52 = arith.maximumf %50, %51 : vector<16x128xf32>
    %53 = vector.extract_strided_slice %43 {offsets = [0, 128], sizes = [16, 128], strides = [1, 1]} : vector<16x256xf32> to vector<16x128xf32>
    %54 = arith.truncf %53 : vector<16x128xf32> to vector<16x128xbf16>
    %55 = vector.extract_strided_slice %44 {offsets = [0, 128], sizes = [128, 128], strides = [1, 1]} : vector<128x256xbf16> to vector<128x128xbf16>
    %cst_19 = arith.constant dense<0.000000e+00> : vector<16x128xf32>
    %56 = tpu.matmul %54, %55, %cst_19 {dimension_numbers = #tpu.dot_dimension_numbers<[1], [0], [0], [1], [0, 0, 1, 1], [], []>} : vector<16x128xbf16>, vector<128x128xbf16>, vector<16x128xf32> -> vector<16x128xf32>
    %57 = vector.broadcast %6 : vector<1x128xf32> to vector<16x128xf32>
    %58 = arith.addf %56, %57 : vector<16x128xf32>
    %cst_20 = arith.constant 0.000000e+00 : f32
    %59 = vector.broadcast %cst_20 : f32 to vector<16x128xf32>
    %60 = arith.maximumf %58, %59 : vector<16x128xf32>
    %c0_21 = arith.constant 0 : index
    %c0_22 = arith.constant 0 : index
    %61 = vector.load %arg6[%c0_21, %c0_22] : memref<256x128xbf16, #tpu.memory_space<vmem>>, vector<256x128xbf16>
    %62 = arith.truncf %52 : vector<16x128xf32> to vector<16x128xbf16>
    %63 = vector.extract_strided_slice %61 {offsets = [0, 0], sizes = [128, 128], strides = [1, 1]} : vector<256x128xbf16> to vector<128x128xbf16>
    %cst_23 = arith.constant dense<0.000000e+00> : vector<16x128xf32>
    %64 = tpu.matmul %62, %63, %cst_23 {dimension_numbers = #tpu.dot_dimension_numbers<[1], [0], [0], [1], [0, 0, 1, 1], [], []>} : vector<16x128xbf16>, vector<128x128xbf16>, vector<16x128xf32> -> vector<16x128xf32>
    %65 = arith.truncf %60 : vector<16x128xf32> to vector<16x128xbf16>
    %66 = vector.extract_strided_slice %61 {offsets = [128, 0], sizes = [128, 128], strides = [1, 1]} : vector<256x128xbf16> to vector<128x128xbf16>
    %cst_24 = arith.constant dense<0.000000e+00> : vector<16x128xf32>
    %67 = tpu.matmul %65, %66, %cst_24 {dimension_numbers = #tpu.dot_dimension_numbers<[1], [0], [0], [1], [0, 0, 1, 1], [], []>} : vector<16x128xbf16>, vector<128x128xbf16>, vector<16x128xf32> -> vector<16x128xf32>
    %68 = arith.addf %64, %67 : vector<16x128xf32>
    %69 = vector.broadcast %7 : vector<1x128xf32> to vector<16x128xf32>
    %70 = arith.addf %68, %69 : vector<16x128xf32>
    %71 = tpu.iota {dimensions = array<i32: 1>} : vector<16x128xi32>
    %c8_i32 = arith.constant 8 : i32
    %72 = vector.broadcast %c8_i32 : i32 to vector<16x128xi32>
    %73 = arith.cmpi slt, %71, %72 : vector<16x128xi32>
    %74 = arith.negf %70 : vector<16x128xf32>
    %75 = math.exp %74 : vector<16x128xf32>
    %cst_25 = arith.constant 1.000000e+00 : f32
    %76 = vector.broadcast %cst_25 : f32 to vector<16x128xf32>
    %77 = arith.addf %76, %75 : vector<16x128xf32>
    %78 = arith.divf %76, %77 : vector<16x128xf32>
    %79 = arith.select %73, %70, %78 : vector<16x128xi1>, vector<16x128xf32>
    %c0_26 = arith.constant 0 : index
    %c0_27 = arith.constant 0 : index
    %80 = vector.load %arg8[%c0_26, %c0_27] : memref<16x128xf32, #tpu.memory_space<vmem>>, vector<16x128xf32>
    tpu.vector_store %arg8[%c0_26, %c0_27], %79 {strides = array<i32>} : memref<16x128xf32, #tpu.memory_space<vmem>>, vector<16x128xf32>,
    return
  }
  func.func @transform_0(%arg0: i32) -> (i32, i32) {
    %c0_i32 = arith.constant 0 : i32
    %c0_i32_0 = arith.constant 0 : i32
    return %arg0, %c0_i32 : i32, i32
  }
  func.func @transform_1(%arg0: i32) -> (i32, i32) {
    %c0_i32 = arith.constant 0 : i32
    %c0_i32_0 = arith.constant 0 : i32
    %c0_i32_1 = arith.constant 0 : i32
    return %c0_i32, %c0_i32_0 : i32, i32
  }
  func.func @transform_2(%arg0: i32) -> (i32, i32) {
    %c0_i32 = arith.constant 0 : i32
    %c0_i32_0 = arith.constant 0 : i32
    %c0_i32_1 = arith.constant 0 : i32
    return %c0_i32, %c0_i32_0 : i32, i32
  }
  func.func @transform_3(%arg0: i32) -> (i32, i32) {
    %c0_i32 = arith.constant 0 : i32
    %c0_i32_0 = arith.constant 0 : i32
    %c0_i32_1 = arith.constant 0 : i32
    return %c0_i32, %c0_i32_0 : i32, i32
  }
  func.func @transform_4(%arg0: i32) -> (i32, i32) {
    %c0_i32 = arith.constant 0 : i32
    %c0_i32_0 = arith.constant 0 : i32
    %c0_i32_1 = arith.constant 0 : i32
    return %c0_i32, %c0_i32_0 : i32, i32
  }
  func.func @transform_5(%arg0: i32) -> (i32, i32) {
    %c0_i32 = arith.constant 0 : i32
    %c0_i32_0 = arith.constant 0 : i32
    %c0_i32_1 = arith.constant 0 : i32
    return %c0_i32, %c0_i32_0 : i32, i32
  }
  func.func @transform_6(%arg0: i32) -> (i32, i32) {
    %c0_i32 = arith.constant 0 : i32
    %c0_i32_0 = arith.constant 0 : i32
    %c0_i32_1 = arith.constant 0 : i32
    return %c0_i32, %c0_i32_0 : i32, i32
  }
  func.func @transform_7(%arg0: i32) -> (i32, i32) {
    %c0_i32 = arith.constant 0 : i32
    %c0_i32_0 = arith.constant 0 : i32
    return %arg0, %c0_i32 : i32, i32
  }
}

</mosaic_0001>

<llo_original>
// kernel: tpu_custom_call.1
$region0: #{tpu_custom_call.1}
  #allocation0 [shape = 'u32[]', space=smem, size = 0x4, offset = 0x4, fixed_abs, tag = 'smem constant byte address 0x4 - core index']
  #allocation1 [shape = 'u32[72,128]{1,0:T(1,128)}', space=vmem, size = 0x9000, scoped, tag = 'internal scratch']
  %s0 = inlined_call_operand.hbm [shape: bf16[32,128], index: 0, kind: input, shape index: {}]
  %s1 = inlined_call_operand.hbm [shape: bf16[128,128], index: 1, kind: input, shape index: {}]
  %s2 = inlined_call_operand.hbm [shape: f32[128,128], index: 2, kind: input, shape index: {}]
  %s3 = inlined_call_operand.hbm [shape: bf16[128,256], index: 3, kind: input, shape index: {}]
  %s4 = inlined_call_operand.hbm [shape: bf16[128,256], index: 4, kind: input, shape index: {}]
  %s5 = inlined_call_operand.hbm [shape: bf16[256,128], index: 5, kind: input, shape index: {}]
  %s6 = inlined_call_operand.hbm [shape: f32[6,256], index: 6, kind: input, shape index: {}]
  %s7 = inlined_call_operand.hbm [shape: f32[32,128], index: 7, kind: output, shape index: {}]
  %s8 = sld [smem:[#allocation0]]
  $region89: #{tpu_custom_call.1} parent=0
    _
  %s10 = ssub.s32 1, %s8
  %s11 = scalar_select 0, %s10, %s8
  $region1: #{tpu_custom_call.1} parent=0
    #allocation2 [shape = 'u8[8192]{0}', space=vmem, size = 0x2000, scoped, tag = 'input window, operand 0']
    #allocation3 [shape = 's32[2]{0}', space=sflag, size = 0x8, scoped, tag = 'scoped memory for tpu_custom_call.1']
    #allocation4 [shape = 's32[2]{0}', space=sflag, size = 0x8, scoped, tag = 'scoped memory for tpu_custom_call.1']
    #allocation5 [shape = 'u8[32768]{0}', space=vmem, size = 0x8000, scoped, tag = 'input window, operand 1, single buffered']
    #allocation6 [shape = 's32[1]{0}', space=sflag, size = 0x4, scoped, tag = 'scoped memory for tpu_custom_call.1']
    #allocation7 [shape = 'u8[65536]{0}', space=vmem, size = 0x10000, scoped, tag = 'input window, operand 2, single buffered']
    #allocation8 [shape = 'u8[65536]{0}', space=vmem, size = 0x10000, scoped, tag = 'input window, operand 3, single buffered']
    #allocation9 [shape = 's32[1]{0}', space=sflag, size = 0x4, scoped, tag = 'scoped memory for tpu_custom_call.1']
    #allocation10 [shape = 'u8[65536]{0}', space=vmem, size = 0x10000, scoped, tag = 'input window, operand 4, single buffered']
    #allocation11 [shape = 'u8[65536]{0}', space=vmem, size = 0x10000, scoped, tag = 'input window, operand 5, single buffered']
    #allocation12 [shape = 's32[1]{0}', space=sflag, size = 0x4, scoped, tag = 'scoped memory for tpu_custom_call.1']
    #allocation13 [shape = 'u8[8192]{0}', space=vmem, size = 0x2000, scoped, tag = 'input window, operand 6, single buffered']
    #allocation14 [shape = 'u8[16384]{0}', space=vmem, size = 0x4000, scoped, tag = 'output window, operand 0']
    %12 = vsyncpa [#allocation3], 0
    %s13 = scalar_lea.sflag [#allocation3], 1
    %14 = vsyncpa %s13, 0
    %15 = vsyncpa [#allocation6], 0
    %16 = vsyncpa [#allocation9], 0
    %17 = vsyncpa [#allocation12], 0
    %18 = vsyncpa [#allocation4], 0
    %s19 = scalar_lea.sflag [#allocation4], 1
    %20 = vsyncpa %s19, 0
    loop: start=0, step=1, limit=4
    $region2: #{tpu_custom_call.1} parent=1 // loop_pre_header
      _
    $region3: #{tpu_custom_call.1} parent=1 // loop_header
      %s22 = sphi 0, %s26
      %p23 = scmp.ge.s32.totalorder %s22, 4
      %s32 = sphi 0, %s34
      %s35 = sphi 0, %s32
      %s36 = sphi 0, %s35
      %s52 = sphi 0, %s36
      %s56 = sphi 0, %s56
      %s58 = sphi 0, %s56
      %s59 = sphi 0, %s58
      %s73 = sphi 0, %s59
      %s77 = sphi 0, %s77
      %s79 = sphi 0, %s77
      %s80 = sphi 0, %s79
      %s94 = sphi 0, %s80
      %s98 = sphi 0, %s98
      %s100 = sphi 0, %s98
      %s101 = sphi 0, %s100
      %s115 = sphi 0, %s101
      %s119 = sphi 0, %s119
      %s121 = sphi 0, %s119
      %s122 = sphi 0, %s121
      %s136 = sphi 0, %s122
      %s140 = sphi 0, %s140
      %s142 = sphi 0, %s140
      %s143 = sphi 0, %s142
      %s157 = sphi 0, %s143
      %s161 = sphi 0, %s161
      %s163 = sphi 0, %s161
      %s164 = sphi 0, %s163
      %s178 = sphi 0, %s164
      %s184 = sphi 0, %s186
      %s187 = sphi 0, %s184
      %s188 = sphi 0, %s187
      %s204 = sphi 0, %s188
    $region4: #{tpu_custom_call.1} parent=1 // loop_header_branch
      %25 = sbr.rel (%p23) target = $region8
    $region5: #{tpu_custom_call.1} parent=1 // loop_body
      %s27 = ssub.s32 %s22, 1
      %s28 = ssub.s32 %s22, 2
      %s29 = sadd.s32 %s22, 1
      %s30 = ssub.s32 %s22, %s29
      %p31 = scmp.eq.s32.totalorder %s30, 0
      %s33 = sadd.s32 %s32, 1
      %s34 = scalar_select %p31, %s32, %s33
      %p37 = pneg %p31
      %p38 = scmp.eq.s32.totalorder %s22, 1
      %p39 = por %p37, %p38
      %p40 = scmp.ne.s32.totalorder %s32, %s35
      %p41 = scmp.eq.s32.totalorder %s22, 0
      %p42 = por %p40, %p41
      %p43 = scmp.ne.s32.totalorder %s32, %s35
      %p44 = scmp.eq.s32.totalorder %s27, 1
      %p45 = por %p43, %p44
      %p46 = scmp.ne.s32.totalorder %s35, %s36
      %p47 = scmp.eq.s32.totalorder %s27, 0
      %p48 = por %p46, %p47
      %p49 = scmp.ne.s32.totalorder %s35, %s36
      %p50 = scmp.eq.s32.totalorder %s28, 1
      %p51 = por %p49, %p50
      %p53 = scmp.ne.s32.totalorder %s36, %s52
      %p54 = scmp.eq.s32.totalorder %s28, 0
      %p55 = por %p53, %p54
      %s57 = sadd.s32 %s56, 1
      %p60 = scmp.eq.s32.totalorder %s22, 1
      %p61 = scmp.ne.s32.totalorder %s56, %s58
      %p62 = scmp.eq.s32.totalorder %s22, 0
      %p63 = por %p61, %p62
      %p64 = scmp.ne.s32.totalorder %s56, %s58
      %p65 = scmp.eq.s32.totalorder %s27, 1
      %p66 = por %p64, %p65
      %p67 = scmp.ne.s32.totalorder %s58, %s59
      %p68 = scmp.eq.s32.totalorder %s27, 0
      %p69 = por %p67, %p68
      %p70 = scmp.ne.s32.totalorder %s58, %s59
      %p71 = scmp.eq.s32.totalorder %s28, 1
      %p72 = por %p70, %p71
      %p74 = scmp.ne.s32.totalorder %s59, %s73
      %p75 = scmp.eq.s32.totalorder %s28, 0
      %p76 = por %p74, %p75
      %s78 = sadd.s32 %s77, 1
      %p81 = scmp.eq.s32.totalorder %s22, 1
      %p82 = scmp.ne.s32.totalorder %s77, %s79
      %p83 = scmp.eq.s32.totalorder %s22, 0
      %p84 = por %p82, %p83
      %p85 = scmp.ne.s32.totalorder %s77, %s79
      %p86 = scmp.eq.s32.totalorder %s27, 1
      %p87 = por %p85, %p86
      %p88 = scmp.ne.s32.totalorder %s79, %s80
      %p89 = scmp.eq.s32.totalorder %s27, 0
      %p90 = por %p88, %p89
      %p91 = scmp.ne.s32.totalorder %s79, %s80
      %p92 = scmp.eq.s32.totalorder %s28, 1
      %p93 = por %p91, %p92
      %p95 = scmp.ne.s32.totalorder %s80, %s94
      %p96 = scmp.eq.s32.totalorder %s28, 0
      %p97 = por %p95, %p96
      %s99 = sadd.s32 %s98, 1
      %p102 = scmp.eq.s32.totalorder %s22, 1
      %p103 = scmp.ne.s32.totalorder %s98, %s100
      %p104 = scmp.eq.s32.totalorder %s22, 0
      %p105 = por %p103, %p104
      %p106 = scmp.ne.s32.totalorder %s98, %s100
      %p107 = scmp.eq.s32.totalorder %s27, 1
      %p108 = por %p106, %p107
      %p109 = scmp.ne.s32.totalorder %s100, %s101
      %p110 = scmp.eq.s32.totalorder %s27, 0
      %p111 = por %p109, %p110
      %p112 = scmp.ne.s32.totalorder %s100, %s101
      %p113 = scmp.eq.s32.totalorder %s28, 1
      %p114 = por %p112, %p113
      %p116 = scmp.ne.s32.totalorder %s101, %s115
      %p117 = scmp.eq.s32.totalorder %s28, 0
      %p118 = por %p116, %p117
      %s120 = sadd.s32 %s119, 1
      %p123 = scmp.eq.s32.totalorder %s22, 1
      %p124 = scmp.ne.s32.totalorder %s119, %s121
      %p125 = scmp.eq.s32.totalorder %s22, 0
      %p126 = por %p124, %p125
      %p127 = scmp.ne.s32.totalorder %s119, %s121
      %p128 = scmp.eq.s32.totalorder %s27, 1
      %p129 = por %p127, %p128
      %p130 = scmp.ne.s32.totalorder %s121, %s122
      %p131 = scmp.eq.s32.totalorder %s27, 0
      %p132 = por %p130, %p131
      %p133 = scmp.ne.s32.totalorder %s121, %s122
      %p134 = scmp.eq.s32.totalorder %s28, 1
      %p135 = por %p133, %p134
      %p137 = scmp.ne.s32.totalorder %s122, %s136
      %p138 = scmp.eq.s32.totalorder %s28, 0
      %p139 = por %p137, %p138
      %s141 = sadd.s32 %s140, 1
      %p144 = scmp.eq.s32.totalorder %s22, 1
      %p145 = scmp.ne.s32.totalorder %s140, %s142
      %p146 = scmp.eq.s32.totalorder %s22, 0
      %p147 = por %p145, %p146
      %p148 = scmp.ne.s32.totalorder %s140, %s142
      %p149 = scmp.eq.s32.totalorder %s27, 1
      %p150 = por %p148, %p149
      %p151 = scmp.ne.s32.totalorder %s142, %s143
      %p152 = scmp.eq.s32.totalorder %s27, 0
      %p153 = por %p151, %p152
      %p154 = scmp.ne.s32.totalorder %s142, %s143
      %p155 = scmp.eq.s32.totalorder %s28, 1
      %p156 = por %p154, %p155
      %p158 = scmp.ne.s32.totalorder %s143, %s157
      %p159 = scmp.eq.s32.totalorder %s28, 0
      %p160 = por %p158, %p159
      %s162 = sadd.s32 %s161, 1
      %p165 = scmp.eq.s32.totalorder %s22, 1
      %p166 = scmp.ne.s32.totalorder %s161, %s163
      %p167 = scmp.eq.s32.totalorder %s22, 0
      %p168 = por %p166, %p167
      %p169 = scmp.ne.s32.totalorder %s161, %s163
      %p170 = scmp.eq.s32.totalorder %s27, 1
      %p171 = por %p169, %p170
      %p172 = scmp.ne.s32.totalorder %s163, %s164
      %p173 = scmp.eq.s32.totalorder %s27, 0
      %p174 = por %p172, %p173
      %p175 = scmp.ne.s32.totalorder %s163, %s164
      %p176 = scmp.eq.s32.totalorder %s28, 1
      %p177 = por %p175, %p176
      %p179 = scmp.ne.s32.totalorder %s164, %s178
      %p180 = scmp.eq.s32.totalorder %s28, 0
      %p181 = por %p179, %p180
      %s182 = ssub.s32 %s22, %s29
      %p183 = scmp.eq.s32.totalorder %s182, 0
      %s185 = sadd.s32 %s184, 1
      %s186 = scalar_select %p183, %s184, %s185
      %p189 = pneg %p183
      %p190 = scmp.eq.s32.totalorder %s22, 1
      %p191 = por %p189, %p190
      %p192 = scmp.ne.s32.totalorder %s184, %s187
      %p193 = scmp.eq.s32.totalorder %s22, 0
      %p194 = por %p192, %p193
      %p195 = scmp.ne.s32.totalorder %s184, %s187
      %p196 = scmp.eq.s32.totalorder %s27, 1
      %p197 = por %p195, %p196
      %p198 = scmp.ne.s32.totalorder %s187, %s188
      %p199 = scmp.eq.s32.totalorder %s27, 0
      %p200 = por %p198, %p199
      %p201 = scmp.ne.s32.totalorder %s187, %s188
      %p202 = scmp.eq.s32.totalorder %s28, 1
      %p203 = por %p201, %p202
      %p205 = scmp.ne.s32.totalorder %s188, %s204
      %p206 = scmp.eq.s32.totalorder %s28, 0
      %p207 = por %p205, %p206
      %p208 = scmp.le.s32.totalorder 1, %s22
      %p209 = scmp.lt.s32.totalorder %s22, 3
      %p210 = pnand %p208, %p209
      %p211 = pneg %p210
      // Predicated region
      $region9: #{tpu_custom_call.1} parent=5 // pred_check
        _
      $region10: #{tpu_custom_call.1} parent=5 // pred_check_branch
        %213 = sbr.rel (%p210) target = $region12
      $region11: #{tpu_custom_call.1} parent=5 // pred_region
        %s214 = ssub.s32 %s22, 1
        // Predicated region
        $region13: #{tpu_custom_call.1} parent=11 // pred_check
          %p215 = pneg %p69
        $region14: #{tpu_custom_call.1} parent=11 // pred_check_branch
          %217 = sbr.rel (%p215) target = $region16
        $region15: #{tpu_custom_call.1} parent=11 // pred_region
          %219 = vsyncadd [#allocation6], 0
          %s220 = sshll.u32 %s1, 4
          %s221 = int_to_ptr.hbm [resolvable:$true] %s220
          %s222 = sshll.u32 [#allocation5], 4
          %s223 = int_to_ptr.vmem [resolvable:$true] %s222
          %228 = dma.hbm_to_vmem [thread:$0]  %s221, 1024, %s223, [#allocation6], 64, 64, 4
        $region16: #{tpu_custom_call.1} parent=11 // pred_fallthru
          _
        // Predicated region
        $region17: #{tpu_custom_call.1} parent=11 // pred_check
          %p229 = pneg %p90
        $region18: #{tpu_custom_call.1} parent=11 // pred_check_branch
          %231 = sbr.rel (%p229) target = $region20
        $region19: #{tpu_custom_call.1} parent=11 // pred_region
          %233 = vsyncadd [#allocation6], 0
          %s234 = sshll.u32 %s2, 4
          %s235 = int_to_ptr.hbm [resolvable:$true] %s234
          %s236 = sshll.u32 [#allocation7], 4
          %s237 = int_to_ptr.vmem [resolvable:$true] %s236
          %242 = dma.hbm_to_vmem [thread:$0]  %s235, 2048, %s237, [#allocation6], 128, 128, 8
        $region20: #{tpu_custom_call.1} parent=11 // pred_fallthru
          _
        // Predicated region
        $region21: #{tpu_custom_call.1} parent=11 // pred_check
          %p243 = pneg %p111
        $region22: #{tpu_custom_call.1} parent=11 // pred_check_branch
          %245 = sbr.rel (%p243) target = $region24
        $region23: #{tpu_custom_call.1} parent=11 // pred_region
          %247 = vsyncadd [#allocation9], 0
          %s248 = sshll.u32 %s3, 4
          %s249 = int_to_ptr.hbm [resolvable:$true] %s248
          %s250 = sshll.u32 [#allocation8], 4
          %s251 = int_to_ptr.vmem [resolvable:$true] %s250
          %256 = dma.hbm_to_vmem [thread:$0]  %s249, 2048, %s251, [#allocation9], 128, 128, 8
        $region24: #{tpu_custom_call.1} parent=11 // pred_fallthru
          _
        // Predicated region
        $region25: #{tpu_custom_call.1} parent=11 // pred_check
          %p257 = pneg %p132
        $region26: #{tpu_custom_call.1} parent=11 // pred_check_branch
          %259 = sbr.rel (%p257) target = $region28
        $region27: #{tpu_custom_call.1} parent=11 // pred_region
          %261 = vsyncadd [#allocation9], 0
          %s262 = sshll.u32 %s4, 4
          %s263 = int_to_ptr.hbm [resolvable:$true] %s262
          %s264 = sshll.u32 [#allocation10], 4
          %s265 = int_to_ptr.vmem [resolvable:$true] %s264
          %270 = dma.hbm_to_vmem [thread:$0]  %s263, 2048, %s265, [#allocation9], 128, 128, 8
        $region28: #{tpu_custom_call.1} parent=11 // pred_fallthru
          _
        // Predicated region
        $region29: #{tpu_custom_call.1} parent=11 // pred_check
          %p271 = pneg %p153
        $region30: #{tpu_custom_call.1} parent=11 // pred_check_branch
          %273 = sbr.rel (%p271) target = $region32
        $region31: #{tpu_custom_call.1} parent=11 // pred_region
          %275 = vsyncadd [#allocation12], 0
          %s276 = sshll.u32 %s5, 4
          %s277 = int_to_ptr.hbm [resolvable:$true] %s276
          %s278 = sshll.u32 [#allocation11], 4
          %s279 = int_to_ptr.vmem [resolvable:$true] %s278
          %284 = dma.hbm_to_vmem [thread:$0]  %s277, 2048, %s279, [#allocation12], 64, 64, 4
        $region32: #{tpu_custom_call.1} parent=11 // pred_fallthru
          _
        // Predicated region
        $region33: #{tpu_custom_call.1} parent=11 // pred_check
          %p285 = pneg %p174
        $region34: #{tpu_custom_call.1} parent=11 // pred_check_branch
          %287 = sbr.rel (%p285) target = $region36
        $region35: #{tpu_custom_call.1} parent=11 // pred_region
          %289 = vsyncadd [#allocation12], 0
          %s291 = sshll.u32 %s6, 4
          %s292 = int_to_ptr.hbm [resolvable:$true] %s291
          %s293 = sshll.u32 [#allocation13], 4
          %s294 = int_to_ptr.vmem [resolvable:$true] %s293
          %296 = dma.hbm_to_vmem [thread:$0]  %s292, 256, %s294, [#allocation12]
        $region36: #{tpu_custom_call.1} parent=11 // pred_fallthru
          _
      $region12: #{tpu_custom_call.1} parent=5 // pred_fallthru
        _
      %p297 = scmp.lt.s32.totalorder %s22, 2
      // Predicated region
      $region37: #{tpu_custom_call.1} parent=5 // pred_check
        %p298 = pneg %p297
      $region38: #{tpu_custom_call.1} parent=5 // pred_check_branch
        %300 = sbr.rel (%p298) target = $region40
      $region39: #{tpu_custom_call.1} parent=5 // pred_region
        // Predicated region
        $region41: #{tpu_custom_call.1} parent=39 // pred_check
          %p301 = pneg %p42
        $region42: #{tpu_custom_call.1} parent=39 // pred_check_branch
          %303 = sbr.rel (%p301) target = $region44
        $region43: #{tpu_custom_call.1} parent=39 // pred_region
          %s304 = sand.u32 %s32, 1
          %s305 = scalar_lea.sflag [#allocation3], %s304
          %s306 = sand.u32 %s32, 1
          %s307 = smul.addr %s306, 8
          %s308 = scalar_lea.vmem [#allocation2], %s307
          %s309 = smul.u32 2, %s22
          %311 = vsyncadd %s305, 0
          %s312 = smul.addr %s309, 4
          %s313 = scalar_lea.hbm %s0, %s312
          %s314 = sshll.u32 %s313, 4
          %s315 = int_to_ptr.hbm [resolvable:$true] %s314
          %s316 = sshll.u32 %s308, 4
          %s317 = int_to_ptr.vmem [resolvable:$true] %s316
          %322 = dma.hbm_to_vmem [thread:$0]  %s315, 128, %s317, %s305, 64, 64, 4
        $region44: #{tpu_custom_call.1} parent=39 // pred_fallthru
          _
      $region40: #{tpu_custom_call.1} parent=5 // pred_fallthru
        _
      %p323 = scmp.le.s32.totalorder 1, %s22
      %p324 = scmp.lt.s32.totalorder %s22, 3
      %p325 = pnand %p323, %p324
      %p326 = pneg %p325
      // Predicated region
      $region45: #{tpu_custom_call.1} parent=5 // pred_check
        _
      $region46: #{tpu_custom_call.1} parent=5 // pred_check_branch
        %328 = sbr.rel (%p325) target = $region48
      $region47: #{tpu_custom_call.1} parent=5 // pred_region
        %s329 = ssub.s32 %s22, 1
        %s330 = sand.u32 %s35, 1
        %s331 = scalar_lea.sflag [#allocation3], %s330
        %s332 = sand.u32 %s35, 1
        %s333 = smul.addr %s332, 8
        %s334 = scalar_lea.vmem [#allocation2], %s333
        // Predicated region
        $region49: #{tpu_custom_call.1} parent=47 // pred_check
          %p335 = pneg %p48
        $region50: #{tpu_custom_call.1} parent=47 // pred_check_branch
          %337 = sbr.rel (%p335) target = $region52
        $region51: #{tpu_custom_call.1} parent=47 // pred_region
          %339 = dma.done %s331, 128
        $region52: #{tpu_custom_call.1} parent=47 // pred_fallthru
          _
        // Predicated region
        $region53: #{tpu_custom_call.1} parent=47 // pred_check
          %p340 = pneg %p69
        $region54: #{tpu_custom_call.1} parent=47 // pred_check_branch
          %342 = sbr.rel (%p340) target = $region56
        $region55: #{tpu_custom_call.1} parent=47 // pred_region
          %344 = dma.done [#allocation6], 1024
        $region56: #{tpu_custom_call.1} parent=47 // pred_fallthru
          _
        // Predicated region
        $region57: #{tpu_custom_call.1} parent=47 // pred_check
          %p345 = pneg %p90
        $region58: #{tpu_custom_call.1} parent=47 // pred_check_branch
          %347 = sbr.rel (%p345) target = $region60
        $region59: #{tpu_custom_call.1} parent=47 // pred_region
          %349 = dma.done [#allocation6], 2048
        $region60: #{tpu_custom_call.1} parent=47 // pred_fallthru
          _
        // Predicated region
        $region61: #{tpu_custom_call.1} parent=47 // pred_check
          %p350 = pneg %p111
        $region62: #{tpu_custom_call.1} parent=47 // pred_check_branch
          %352 = sbr.rel (%p350) target = $region64
        $region63: #{tpu_custom_call.1} parent=47 // pred_region
          %354 = dma.done [#allocation9], 2048
        $region64: #{tpu_custom_call.1} parent=47 // pred_fallthru
          _
        // Predicated region
        $region65: #{tpu_custom_call.1} parent=47 // pred_check
          %p355 = pneg %p132
        $region66: #{tpu_custom_call.1} parent=47 // pred_check_branch
          %357 = sbr.rel (%p355) target = $region68
        $region67: #{tpu_custom_call.1} parent=47 // pred_region
          %359 = dma.done [#allocation9], 2048
        $region68: #{tpu_custom_call.1} parent=47 // pred_fallthru
          _
        // Predicated region
        $region69: #{tpu_custom_call.1} parent=47 // pred_check
          %p360 = pneg %p153
        $region70: #{tpu_custom_call.1} parent=47 // pred_check_branch
          %362 = sbr.rel (%p360) target = $region72
        $region71: #{tpu_custom_call.1} parent=47 // pred_region
          %364 = dma.done [#allocation12], 2048
        $region72: #{tpu_custom_call.1} parent=47 // pred_fallthru
          _
        // Predicated region
        $region73: #{tpu_custom_call.1} parent=47 // pred_check
          %p365 = pneg %p174
        $region74: #{tpu_custom_call.1} parent=47 // pred_check_branch
          %367 = sbr.rel (%p365) target = $region76
        $region75: #{tpu_custom_call.1} parent=47 // pred_region
          %369 = dma.done [#allocation12], 256
        $region76: #{tpu_custom_call.1} parent=47 // pred_fallthru
          _
        %s370 = sand.u32 %s35, 1
        %s371 = scalar_lea.sflag [#allocation3], %s370
        %s372 = sand.u32 %s35, 1
        %s373 = smul.addr %s372, 8
        %s374 = scalar_lea.vmem [#allocation2], %s373
        %p375 = pneg %p48
        %p376 = pneg %p45
        %p377 = pneg %p69
        %p378 = pneg %p66
        %p379 = pneg %p90
        %p380 = pneg %p87
        %p381 = pneg %p111
        %p382 = pneg %p108
        %p383 = pneg %p132
        %p384 = pneg %p129
        %p385 = pneg %p153
        %p386 = pneg %p150
        %p387 = pneg %p174
        %p388 = pneg %p171
        %p389 = pneg %p200
        %p390 = pneg %p197
        %s391 = sand.u32 %s187, 1
        %s392 = scalar_lea.sflag [#allocation4], %s391
        %s393 = sand.u32 %s187, 1
        %s394 = smul.addr %s393, 16
        %s395 = scalar_lea.vmem [#allocation14], %s394
        %s396 = smul.u32 2, %s27
        %s397 = smul.u32 2, %s27
        %v398 = vld [vmem:[#allocation13] sm:$0x3f]
        %v399 = vld [vmem:[#allocation13 + $0x8] sm:$0x3f]
        %v400 = vld [vmem:[%s334] sm:$0xf]
        %v401 = vld [vmem:[%s334 + $0x4] sm:$0xf]
        %v402 = vld [vmem:[#allocation5] sm:$0xf]
        %v403 = vld [vmem:[#allocation5 + $0x4] sm:$0xf]
        %v404 = vld [vmem:[#allocation5 + $0x8] sm:$0xf]
        %v405 = vld [vmem:[#allocation5 + $0xc] sm:$0xf]
        %v406 = vld [vmem:[#allocation5 + $0x10] sm:$0xf]
        %v407 = vld [vmem:[#allocation5 + $0x14] sm:$0xf]
        %v408 = vld [vmem:[#allocation5 + $0x18] sm:$0xf]
        %v409 = vld [vmem:[#allocation5 + $0x1c] sm:$0xf]
        %v410 = vld [vmem:[#allocation5 + $0x20] sm:$0xf]
        %v411 = vld [vmem:[#allocation5 + $0x24] sm:$0xf]
        %v412 = vld [vmem:[#allocation5 + $0x28] sm:$0xf]
        %v413 = vld [vmem:[#allocation5 + $0x2c] sm:$0xf]
        %v414 = vld [vmem:[#allocation5 + $0x30] sm:$0xf]
        %v415 = vld [vmem:[#allocation5 + $0x34] sm:$0xf]
        %v416 = vld [vmem:[#allocation5 + $0x38] sm:$0xf]
        %v417 = vld [vmem:[#allocation5 + $0x3c] sm:$0xf]
        %v418 = vperm.slane %v398, 0
        %v421 = vunpack.c.l.b16 %v400
        %v422 = vunpack.c.l.b16 %v401
        %v423 = vpack.c.b16 %v422, %v421
        %v441 = vunpack.c.l.b16 %v402
        %v442 = vunpack.c.l.b16 %v403
        %v443 = vunpack.c.l.b16 %v404
        %v444 = vunpack.c.l.b16 %v405
        %v445 = vunpack.c.l.b16 %v406
        %v446 = vunpack.c.l.b16 %v407
        %v447 = vunpack.c.l.b16 %v408
        %v448 = vunpack.c.l.b16 %v409
        %v449 = vunpack.c.l.b16 %v410
        %v450 = vunpack.c.l.b16 %v411
        %v451 = vunpack.c.l.b16 %v412
        %v452 = vunpack.c.l.b16 %v413
        %v453 = vunpack.c.l.b16 %v414
        %v454 = vunpack.c.l.b16 %v415
        %v455 = vunpack.c.l.b16 %v416
        %v456 = vunpack.c.l.b16 %v417
        %v457 = vpack.c.b16 %v442, %v441
        %v458 = vpack.c.b16 %v444, %v443
        %v459 = vpack.c.b16 %v446, %v445
        %v460 = vpack.c.b16 %v448, %v447
        %v461 = vpack.c.b16 %v450, %v449
        %v462 = vpack.c.b16 %v452, %v451
        %v463 = vpack.c.b16 %v454, %v453
        %v464 = vpack.c.b16 %v456, %v455
        %473 = vmatpush.bf16.msra.mxu0 %v464
        %474 = vmatpush.bf16.msra.mxu0 %v463
        %475 = vmatpush.bf16.msra.mxu0 %v462
        %476 = vmatpush.bf16.msra.mxu0 %v461
        %477 = vmatpush.bf16.msra.mxu0 %v460
        %478 = vmatpush.bf16.msra.mxu0 %v459
        %479 = vmatpush.bf16.msra.mxu0 %v458
        %480 = vmatpush.bf16.msra.mxu0 %v457
        %481 = vmatmul.bf16.gmra.mxu0 %v423
        %v482 = vpop.f32.mrf.mxu0
        %v483 = vadd.f32 %v418, %v482
        %v484 = vpop.f32.mrf.mxu0
        %v485 = vadd.f32 %v418, %v484
        %486 = vdwg.mxu0
        %v487 = vmul.f32 %v483, %v483
        %v488 = vmul.f32 %v485, %v485
        %v489 = vadd.f32 %v483, %v485
        %v490 = vrot.slane %v489, 4
        %v491 = vadd.f32 %v489, %v490
        %v492 = vrot.slane %v491, 2
        %v493 = vadd.f32 %v491, %v492
        %v494 = vrot.slane %v493, 1
        %v495 = vadd.f32 %v493, %v494
        %v496 = vadd.f32 %v487, %v488
        %v497 = vrot.slane %v496, 4
        %v498 = vadd.f32 %v496, %v497
        %v499 = vrot.slane %v498, 2
        %v500 = vadd.f32 %v498, %v499
        %v501 = vrot.slane %v500, 1
        %v502 = vadd.f32 %v500, %v501
        %v503 = vld [vmem:[#allocation7] sm:$0xff]
        %v504 = vld [vmem:[#allocation7 + $0x8] sm:$0xff]
        %v505 = vld [vmem:[#allocation7 + $0x10] sm:$0xff]
        %v506 = vld [vmem:[#allocation7 + $0x18] sm:$0xff]
        %v507 = vld [vmem:[#allocation7 + $0x20] sm:$0xff]
        %v508 = vld [vmem:[#allocation7 + $0x28] sm:$0xff]
        %v509 = vld [vmem:[#allocation7 + $0x30] sm:$0xff]
        %v510 = vld [vmem:[#allocation7 + $0x38] sm:$0xff]
        %v511 = vld [vmem:[#allocation7 + $0x40] sm:$0xff]
        %v512 = vld [vmem:[#allocation7 + $0x48] sm:$0xff]
        %v513 = vld [vmem:[#allocation7 + $0x50] sm:$0xff]
        %v514 = vld [vmem:[#allocation7 + $0x58] sm:$0xff]
        %v515 = vld [vmem:[#allocation7 + $0x60] sm:$0xff]
        %v516 = vld [vmem:[#allocation7 + $0x68] sm:$0xff]
        %v517 = vld [vmem:[#allocation7 + $0x70] sm:$0xff]
        %v518 = vld [vmem:[#allocation7 + $0x78] sm:$0xff]
        %519 = vmatpush.msra.mxu0 %v518
        %520 = vmatpush.msra.mxu0 %v517
        %521 = vmatpush.msra.mxu0 %v516
        %522 = vmatpush.msra.mxu0 %v515
        %523 = vmatpush.msra.mxu0 %v514
        %524 = vmatpush.msra.mxu0 %v513
        %525 = vmatpush.msra.mxu0 %v512
        %526 = vmatpush.msra.mxu0 %v511
        %527 = vmatpush.msra.mxu0 %v510
        %528 = vmatpush.msra.mxu0 %v509
        %529 = vmatpush.msra.mxu0 %v508
        %530 = vmatpush.msra.mxu0 %v507
        %531 = vmatpush.msra.mxu0 %v506
        %532 = vmatpush.msra.mxu0 %v505
        %533 = vmatpush.msra.mxu0 %v504
        %534 = vmatpush.msra.mxu0 %v503
        %535 = vmatmul.f32.gmra.mxu0 %v495
        %v536 = vpop.f32.mrf.mxu0
        %v537 = vadd.f32 0.0, %v536
        %538 = vdwg.mxu0
        %539 = vmatpush.msra.mxu0 %v518
        %540 = vmatpush.msra.mxu0 %v517
        %541 = vmatpush.msra.mxu0 %v516
        %542 = vmatpush.msra.mxu0 %v515
        %543 = vmatpush.msra.mxu0 %v514
        %544 = vmatpush.msra.mxu0 %v513
        %545 = vmatpush.msra.mxu0 %v512
        %546 = vmatpush.msra.mxu0 %v511
        %547 = vmatpush.msra.mxu0 %v510
        %548 = vmatpush.msra.mxu0 %v509
        %549 = vmatpush.msra.mxu0 %v508
        %550 = vmatpush.msra.mxu0 %v507
        %551 = vmatpush.msra.mxu0 %v506
        %552 = vmatpush.msra.mxu0 %v505
        %553 = vmatpush.msra.mxu0 %v504
        %554 = vmatpush.msra.mxu0 %v503
        %555 = vmatmul.f32.gmra.mxu0 %v502
        %v556 = vpop.f32.mrf.mxu0
        %v557 = vadd.f32 0.0, %v556
        %558 = vdwg.mxu0
        %v559 = vmul.f32 %v537, %v537
        %v560 = vsub.f32 %v557, %v559
        %v561 = vadd.f32 %v560, 1e-05
        %v562 = vrsqrt.pop %v561
        %v563 = vmul.f32 %v562, %v561
        %v564 = vmul.f32 %v563, %v562
        %v565 = vmul.f32 0.5, %v564
        %v566 = vsub.f32 1.5, %v565
        %v567 = vmul.f32 %v562, %v566
        %vm568 = vweird.f32 %v561
        %vm569 = vweird.f32 %v562
        %vm570 = vmor %vm568, %vm569
        %v571 = vsel %vm570, %v562, %v567
        %v573 = vrot.slane %v398, 1
        %v575 = vmul.f32 %v571, %v573
        %v576 = vmul.f32 %v537, %v575
        %v578 = vrot.slane %v576, 6
        %v580 = vsub.f32 %v398, %v578
        %v581 = vperm.slane %v575, 0
        %v582 = vmul.f32 %v483, %v581
        %v583 = vmul.f32 %v485, %v581
        %v584 = vperm.slane %v580, 2
        %v585 = vadd.f32 %v582, %v584
        %v586 = vadd.f32 %v583, %v584
        %v587 = vpack.c.bf16 %v586, %v585
        %v588 = vld [vmem:[#allocation8] sm:$0xff]
        %v589 = vld [vmem:[#allocation8 + $0x8] sm:$0xff]
        %v590 = vld [vmem:[#allocation8 + $0x10] sm:$0xff]
        %v591 = vld [vmem:[#allocation8 + $0x18] sm:$0xff]
        %v592 = vld [vmem:[#allocation8 + $0x20] sm:$0xff]
        %v593 = vld [vmem:[#allocation8 + $0x28] sm:$0xff]
        %v594 = vld [vmem:[#allocation8 + $0x30] sm:$0xff]
        %v595 = vld [vmem:[#allocation8 + $0x38] sm:$0xff]
        %v596 = vld [vmem:[#allocation8 + $0x40] sm:$0xff]
        %v597 = vld [vmem:[#allocation8 + $0x48] sm:$0xff]
        %v598 = vld [vmem:[#allocation8 + $0x50] sm:$0xff]
        %v599 = vld [vmem:[#allocation8 + $0x58] sm:$0xff]
        %v600 = vld [vmem:[#allocation8 + $0x60] sm:$0xff]
        %v601 = vld [vmem:[#allocation8 + $0x68] sm:$0xff]
        %v602 = vld [vmem:[#allocation8 + $0x70] sm:$0xff]
        %v603 = vld [vmem:[#allocation8 + $0x78] sm:$0xff]
        %v604 = vperm.slane %v398, 3
        %v605 = vperm.slane %v399, 3
        %v622 = vunpack.c.l.b16 %v588
        %v623 = vunpack.c.h.b16 %v588
        %v624 = vunpack.c.l.b16 %v589
        %v625 = vunpack.c.h.b16 %v589
        %v626 = vunpack.c.l.b16 %v590
        %v627 = vunpack.c.h.b16 %v590
        %v628 = vunpack.c.l.b16 %v591
        %v629 = vunpack.c.h.b16 %v591
        %v630 = vunpack.c.l.b16 %v592
        %v631 = vunpack.c.h.b16 %v592
        %v632 = vunpack.c.l.b16 %v593
        %v633 = vunpack.c.h.b16 %v593
        %v634 = vunpack.c.l.b16 %v594
        %v635 = vunpack.c.h.b16 %v594
        %v636 = vunpack.c.l.b16 %v595
        %v637 = vunpack.c.h.b16 %v595
        %v638 = vunpack.c.l.b16 %v596
        %v639 = vunpack.c.h.b16 %v596
        %v640 = vunpack.c.l.b16 %v597
        %v641 = vunpack.c.h.b16 %v597
        %v642 = vunpack.c.l.b16 %v598
        %v643 = vunpack.c.h.b16 %v598
        %v644 = vunpack.c.l.b16 %v599
        %v645 = vunpack.c.h.b16 %v599
        %v646 = vunpack.c.l.b16 %v600
        %v647 = vunpack.c.h.b16 %v600
        %v648 = vunpack.c.l.b16 %v601
        %v649 = vunpack.c.h.b16 %v601
        %v650 = vunpack.c.l.b16 %v602
        %v651 = vunpack.c.h.b16 %v602
        %v652 = vunpack.c.l.b16 %v603
        %v653 = vunpack.c.h.b16 %v603
        %v654 = vpack.c.b16 %v624, %v622
        %v655 = vpack.c.b16 %v625, %v623
        %v656 = vpack.c.b16 %v628, %v626
        %v657 = vpack.c.b16 %v629, %v627
        %v658 = vpack.c.b16 %v632, %v630
        %v659 = vpack.c.b16 %v633, %v631
        %v660 = vpack.c.b16 %v636, %v634
        %v661 = vpack.c.b16 %v637, %v635
        %v662 = vpack.c.b16 %v640, %v638
        %v663 = vpack.c.b16 %v641, %v639
        %v664 = vpack.c.b16 %v644, %v642
        %v665 = vpack.c.b16 %v645, %v643
        %v666 = vpack.c.b16 %v648, %v646
        %v667 = vpack.c.b16 %v649, %v647
        %v668 = vpack.c.b16 %v652, %v650
        %v669 = vpack.c.b16 %v653, %v651
        %686 = vmatpush.bf16.msra.mxu0 %v668
        %687 = vmatpush.bf16.msra.mxu0 %v666
        %688 = vmatpush.bf16.msra.mxu0 %v664
        %689 = vmatpush.bf16.msra.mxu0 %v662
        %690 = vmatpush.bf16.msra.mxu0 %v660
        %691 = vmatpush.bf16.msra.mxu0 %v658
        %692 = vmatpush.bf16.msra.mxu0 %v656
        %693 = vmatpush.bf16.msra.mxu0 %v654
        %694 = vmatmul.bf16.gmra.mxu0 %v587
        %v695 = vpop.f32.mrf.mxu0
        %v696 = vadd.f32 %v604, %v695
        %v697 = vpop.f32.mrf.mxu0
        %v698 = vadd.f32 %v604, %v697
        %699 = vdwg.mxu0
        %700 = vmatpush.bf16.msra.mxu0 %v669
        %701 = vmatpush.bf16.msra.mxu0 %v667
        %702 = vmatpush.bf16.msra.mxu0 %v665
        %703 = vmatpush.bf16.msra.mxu0 %v663
        %704 = vmatpush.bf16.msra.mxu0 %v661
        %705 = vmatpush.bf16.msra.mxu0 %v659
        %706 = vmatpush.bf16.msra.mxu0 %v657
        %707 = vmatpush.bf16.msra.mxu0 %v655
        %708 = vmatmul.bf16.gmra.mxu0 %v587
        %v709 = vpop.f32.mrf.mxu0
        %v710 = vadd.f32 %v605, %v709
        %v711 = vpop.f32.mrf.mxu0
        %v712 = vadd.f32 %v605, %v711
        %713 = vdwg.mxu0
        %v714 = vmax.f32 %v696, 0.0
        %v715 = vmax.f32 %v710, 0.0
        %v716 = vmax.f32 %v698, 0.0
        %v717 = vmax.f32 %v712, 0.0
        %v718 = vld [vmem:[#allocation10] sm:$0xff]
        %v719 = vld [vmem:[#allocation10 + $0x8] sm:$0xff]
        %v720 = vld [vmem:[#allocation10 + $0x10] sm:$0xff]
        %v721 = vld [vmem:[#allocation10 + $0x18] sm:$0xff]
        %v722 = vld [vmem:[#allocation10 + $0x20] sm:$0xff]
        %v723 = vld [vmem:[#allocation10 + $0x28] sm:$0xff]
        %v724 = vld [vmem:[#allocation10 + $0x30] sm:$0xff]
        %v725 = vld [vmem:[#allocation10 + $0x38] sm:$0xff]
        %v726 = vld [vmem:[#allocation10 + $0x40] sm:$0xff]
        %v727 = vld [vmem:[#allocation10 + $0x48] sm:$0xff]
        %v728 = vld [vmem:[#allocation10 + $0x50] sm:$0xff]
        %v729 = vld [vmem:[#allocation10 + $0x58] sm:$0xff]
        %v730 = vld [vmem:[#allocation10 + $0x60] sm:$0xff]
        %v731 = vld [vmem:[#allocation10 + $0x68] sm:$0xff]
        %v732 = vld [vmem:[#allocation10 + $0x70] sm:$0xff]
        %v733 = vld [vmem:[#allocation10 + $0x78] sm:$0xff]
        %v734 = vpack.c.bf16 %v716, %v714
        %v735 = vperm.slane %v398, 4
        %v752 = vunpack.c.l.b16 %v718
        %v753 = vunpack.c.l.b16 %v719
        %v754 = vunpack.c.l.b16 %v720
        %v755 = vunpack.c.l.b16 %v721
        %v756 = vunpack.c.l.b16 %v722
        %v757 = vunpack.c.l.b16 %v723
        %v758 = vunpack.c.l.b16 %v724
        %v759 = vunpack.c.l.b16 %v725
        %v760 = vunpack.c.l.b16 %v726
        %v761 = vunpack.c.l.b16 %v727
        %v762 = vunpack.c.l.b16 %v728
        %v763 = vunpack.c.l.b16 %v729
        %v764 = vunpack.c.l.b16 %v730
        %v765 = vunpack.c.l.b16 %v731
        %v766 = vunpack.c.l.b16 %v732
        %v767 = vunpack.c.l.b16 %v733
        %v768 = vpack.c.b16 %v753, %v752
        %v769 = vpack.c.b16 %v755, %v754
        %v770 = vpack.c.b16 %v757, %v756
        %v771 = vpack.c.b16 %v759, %v758
        %v772 = vpack.c.b16 %v761, %v760
        %v773 = vpack.c.b16 %v763, %v762
        %v774 = vpack.c.b16 %v765, %v764
        %v775 = vpack.c.b16 %v767, %v766
        %784 = vmatpush.bf16.msra.mxu0 %v775
        %785 = vmatpush.bf16.msra.mxu0 %v774
        %786 = vmatpush.bf16.msra.mxu0 %v773
        %787 = vmatpush.bf16.msra.mxu0 %v772
        %788 = vmatpush.bf16.msra.mxu0 %v771
        %789 = vmatpush.bf16.msra.mxu0 %v770
        %790 = vmatpush.bf16.msra.mxu0 %v769
        %791 = vmatpush.bf16.msra.mxu0 %v768
        %792 = vmatmul.bf16.gmra.mxu0 %v734
        %v793 = vpop.f32.mrf.mxu0
        %v794 = vadd.f32 %v735, %v793
        %v795 = vpop.f32.mrf.mxu0
        %v796 = vadd.f32 %v735, %v795
        %797 = vdwg.mxu0
        %v798 = vmax.f32 %v794, 0.0
        %v799 = vmax.f32 %v796, 0.0
        %v800 = vpack.c.bf16 %v717, %v715
        %v801 = vperm.slane %v399, 4
        %v802 = vunpack.c.h.b16 %v718
        %v803 = vunpack.c.h.b16 %v719
        %v804 = vunpack.c.h.b16 %v720
        %v805 = vunpack.c.h.b16 %v721
        %v806 = vunpack.c.h.b16 %v722
        %v807 = vunpack.c.h.b16 %v723
        %v808 = vunpack.c.h.b16 %v724
        %v809 = vunpack.c.h.b16 %v725
        %v810 = vunpack.c.h.b16 %v726
        %v811 = vunpack.c.h.b16 %v727
        %v812 = vunpack.c.h.b16 %v728
        %v813 = vunpack.c.h.b16 %v729
        %v814 = vunpack.c.h.b16 %v730
        %v815 = vunpack.c.h.b16 %v731
        %v816 = vunpack.c.h.b16 %v732
        %v817 = vunpack.c.h.b16 %v733
        %v818 = vpack.c.b16 %v803, %v802
        %v819 = vpack.c.b16 %v805, %v804
        %v820 = vpack.c.b16 %v807, %v806
        %v821 = vpack.c.b16 %v809, %v808
        %v822 = vpack.c.b16 %v811, %v810
        %v823 = vpack.c.b16 %v813, %v812
        %v824 = vpack.c.b16 %v815, %v814
        %v825 = vpack.c.b16 %v817, %v816
        %834 = vmatpush.bf16.msra.mxu0 %v825
        %835 = vmatpush.bf16.msra.mxu0 %v824
        %836 = vmatpush.bf16.msra.mxu0 %v823
        %837 = vmatpush.bf16.msra.mxu0 %v822
        %838 = vmatpush.bf16.msra.mxu0 %v821
        %839 = vmatpush.bf16.msra.mxu0 %v820
        %840 = vmatpush.bf16.msra.mxu0 %v819
        %841 = vmatpush.bf16.msra.mxu0 %v818
        %842 = vmatmul.bf16.gmra.mxu0 %v800
        %v843 = vpop.f32.mrf.mxu0
        %v844 = vadd.f32 %v801, %v843
        %v845 = vpop.f32.mrf.mxu0
        %v846 = vadd.f32 %v801, %v845
        %847 = vdwg.mxu0
        %v848 = vmax.f32 %v844, 0.0
        %v849 = vmax.f32 %v846, 0.0
        %v850 = vld [vmem:[#allocation11] sm:$0xf]
        %v851 = vld [vmem:[#allocation11 + $0x4] sm:$0xf]
        %v852 = vld [vmem:[#allocation11 + $0x8] sm:$0xf]
        %v853 = vld [vmem:[#allocation11 + $0xc] sm:$0xf]
        %v854 = vld [vmem:[#allocation11 + $0x10] sm:$0xf]
        %v855 = vld [vmem:[#allocation11 + $0x14] sm:$0xf]
        %v856 = vld [vmem:[#allocation11 + $0x18] sm:$0xf]
        %v857 = vld [vmem:[#allocation11 + $0x1c] sm:$0xf]
        %v858 = vld [vmem:[#allocation11 + $0x20] sm:$0xf]
        %v859 = vld [vmem:[#allocation11 + $0x24] sm:$0xf]
        %v860 = vld [vmem:[#allocation11 + $0x28] sm:$0xf]
        %v861 = vld [vmem:[#allocation11 + $0x2c] sm:$0xf]
        %v862 = vld [vmem:[#allocation11 + $0x30] sm:$0xf]
        %v863 = vld [vmem:[#allocation11 + $0x34] sm:$0xf]
        %v864 = vld [vmem:[#allocation11 + $0x38] sm:$0xf]
        %v865 = vld [vmem:[#allocation11 + $0x3c] sm:$0xf]
        %v866 = vld [vmem:[#allocation11 + $0x40] sm:$0xf]
        %v867 = vld [vmem:[#allocation11 + $0x44] sm:$0xf]
        %v868 = vld [vmem:[#allocation11 + $0x48] sm:$0xf]
        %v869 = vld [vmem:[#allocation11 + $0x4c] sm:$0xf]
        %v870 = vld [vmem:[#allocation11 + $0x50] sm:$0xf]
        %v871 = vld [vmem:[#allocation11 + $0x54] sm:$0xf]
        %v872 = vld [vmem:[#allocation11 + $0x58] sm:$0xf]
        %v873 = vld [vmem:[#allocation11 + $0x5c] sm:$0xf]
        %v874 = vld [vmem:[#allocation11 + $0x60] sm:$0xf]
        %v875 = vld [vmem:[#allocation11 + $0x64] sm:$0xf]
        %v876 = vld [vmem:[#allocation11 + $0x68] sm:$0xf]
        %v877 = vld [vmem:[#allocation11 + $0x6c] sm:$0xf]
        %v878 = vld [vmem:[#allocation11 + $0x70] sm:$0xf]
        %v879 = vld [vmem:[#allocation11 + $0x74] sm:$0xf]
        %v880 = vld [vmem:[#allocation11 + $0x78] sm:$0xf]
        %v881 = vld [vmem:[#allocation11 + $0x7c] sm:$0xf]
        %v882 = vpack.c.bf16 %v799, %v798
        %v883 = vpack.c.bf16 %v849, %v848
        %v900 = vunpack.c.l.b16 %v866
        %v901 = vunpack.c.l.b16 %v867
        %v902 = vunpack.c.l.b16 %v868
        %v903 = vunpack.c.l.b16 %v869
        %v904 = vunpack.c.l.b16 %v870
        %v905 = vunpack.c.l.b16 %v871
        %v906 = vunpack.c.l.b16 %v872
        %v907 = vunpack.c.l.b16 %v873
        %v908 = vunpack.c.l.b16 %v874
        %v909 = vunpack.c.l.b16 %v875
        %v910 = vunpack.c.l.b16 %v876
        %v911 = vunpack.c.l.b16 %v877
        %v912 = vunpack.c.l.b16 %v878
        %v913 = vunpack.c.l.b16 %v879
        %v914 = vunpack.c.l.b16 %v880
        %v915 = vunpack.c.l.b16 %v881
        %v916 = vpack.c.b16 %v901, %v900
        %v917 = vpack.c.b16 %v903, %v902
        %v918 = vpack.c.b16 %v905, %v904
        %v919 = vpack.c.b16 %v907, %v906
        %v920 = vpack.c.b16 %v909, %v908
        %v921 = vpack.c.b16 %v911, %v910
        %v922 = vpack.c.b16 %v913, %v912
        %v923 = vpack.c.b16 %v915, %v914
        %932 = vmatpush.bf16.msra.mxu0 %v923
        %933 = vmatpush.bf16.msra.mxu0 %v922
        %934 = vmatpush.bf16.msra.mxu0 %v921
        %935 = vmatpush.bf16.msra.mxu0 %v920
        %936 = vmatpush.bf16.msra.mxu0 %v919
        %937 = vmatpush.bf16.msra.mxu0 %v918
        %938 = vmatpush.bf16.msra.mxu0 %v917
        %939 = vmatpush.bf16.msra.mxu0 %v916
        %940 = vmatmul.bf16.gmra.mxu0 %v883
        %v941 = vpop.f32.mrf.mxu0
        %v942 = vadd.f32 0.0, %v941
        %v943 = vpop.f32.mrf.mxu0
        %v944 = vadd.f32 0.0, %v943
        %945 = vdwg.mxu0
        %v962 = vunpack.c.l.b16 %v850
        %v963 = vunpack.c.l.b16 %v851
        %v964 = vunpack.c.l.b16 %v852
        %v965 = vunpack.c.l.b16 %v853
        %v966 = vunpack.c.l.b16 %v854
        %v967 = vunpack.c.l.b16 %v855
        %v968 = vunpack.c.l.b16 %v856
        %v969 = vunpack.c.l.b16 %v857
        %v970 = vunpack.c.l.b16 %v858
        %v971 = vunpack.c.l.b16 %v859
        %v972 = vunpack.c.l.b16 %v860
        %v973 = vunpack.c.l.b16 %v861
        %v974 = vunpack.c.l.b16 %v862
        %v975 = vunpack.c.l.b16 %v863
        %v976 = vunpack.c.l.b16 %v864
        %v977 = vunpack.c.l.b16 %v865
        %v978 = vpack.c.b16 %v963, %v962
        %v979 = vpack.c.b16 %v965, %v964
        %v980 = vpack.c.b16 %v967, %v966
        %v981 = vpack.c.b16 %v969, %v968
        %v982 = vpack.c.b16 %v971, %v970
        %v983 = vpack.c.b16 %v973, %v972
        %v984 = vpack.c.b16 %v975, %v974
        %v985 = vpack.c.b16 %v977, %v976
        %994 = vmatpush.bf16.msra.mxu0 %v985
        %995 = vmatpush.bf16.msra.mxu0 %v984
        %996 = vmatpush.bf16.msra.mxu0 %v983
        %997 = vmatpush.bf16.msra.mxu0 %v982
        %998 = vmatpush.bf16.msra.mxu0 %v981
        %999 = vmatpush.bf16.msra.mxu0 %v980
        %1000 = vmatpush.bf16.msra.mxu0 %v979
        %1001 = vmatpush.bf16.msra.mxu0 %v978
        %1002 = vmatmul.bf16.gmra.mxu0 %v882
        %v1003 = vpop.f32.mrf.mxu0
        %v1004 = vadd.f32 %v942, %v1003
        %v1005 = vpop.f32.mrf.mxu0
        %v1006 = vadd.f32 %v944, %v1005
        %1007 = vdwg.mxu0
        %v1008 = vperm.slane %v398, 5
        %v1009 = vadd.f32 %v1004, %v1008
        %v1010 = vadd.f32 %v1006, %v1008
        %v1011 = vlaneseq
        %v1012 = vand.u32 %v1011, 127
        %vm1013 = vcmp.lt.s32.totalorder %v1012, 8
        %v1014 = vxor.u32 %v1009, 2147483648
        %v1015 = vxor.u32 %v1010, 2147483648
        %v1016 = vmul.f32 %v1014, 1.442695
        %v1017 = vpow.pop %v1016
        %v1018 = vmul.f32 %v1015, 1.442695
        %v1019 = vpow.pop %v1018
        %v1020 = vadd.f32 %v1017, 1.0
        %v1021 = vadd.f32 %v1019, 1.0
        %v1022 = vrcp.pop %v1020
        %v1023 = vmul.f32 %v1020, %v1022
        %v1024 = vsub.f32 1.0, %v1023
        %v1025 = vmul.f32 %v1022, %v1024
        %v1026 = vadd.f32 %v1022, %v1025
        %vm1027 = vweird.f32 %v1020
        %vm1028 = vweird.f32 %v1022
        %vm1029 = vmor %vm1027, %vm1028
        %v1030 = vsel %vm1029, %v1022, %v1026
        %v1031 = vand.u32 2147483647, %v1020
        %vm1032 = vcmp.eq.f32.partialorder %v1031, 8.507059e+37
        %v1033 = vand.u32 %v1020, 2147483648
        %v1034 = vor.u32 1.1754944e-38, %v1033
        %v1035 = vsel %vm1032, %v1034, %v1030
        %v1036 = vmul.f32 1.0, %v1035
        %v1037 = vrcp.pop %v1021
        %v1038 = vmul.f32 %v1021, %v1037
        %v1039 = vsub.f32 1.0, %v1038
        %v1040 = vmul.f32 %v1037, %v1039
        %v1041 = vadd.f32 %v1037, %v1040
        %vm1042 = vweird.f32 %v1021
        %vm1043 = vweird.f32 %v1037
        %vm1044 = vmor %vm1042, %vm1043
        %v1045 = vsel %vm1044, %v1037, %v1041
        %v1046 = vand.u32 2147483647, %v1021
        %vm1047 = vcmp.eq.f32.partialorder %v1046, 8.507059e+37
        %v1048 = vand.u32 %v1021, 2147483648
        %v1049 = vor.u32 1.1754944e-38, %v1048
        %v1050 = vsel %vm1047, %v1049, %v1045
        %v1051 = vmul.f32 1.0, %v1050
        %v1052 = vsel %vm1013, %v1009, %v1036
        %v1053 = vsel %vm1013, %v1010, %v1051
        %1054 = vst [vmem:[%s395] sm:$0xff] %v1052
        %1055 = vst [vmem:[%s395 + $0x8] sm:$0xff] %v1053
        %s1056 = sand.u32 %s187, 1
        %s1057 = scalar_lea.sflag [#allocation4], %s1056
        %s1058 = sand.u32 %s187, 1
        %s1059 = smul.addr %s1058, 16
        %s1060 = scalar_lea.vmem [#allocation14], %s1059
        // Predicated region
        $region77: #{tpu_custom_call.1} parent=47 // pred_check
          %p1061 = pneg %p197
        $region78: #{tpu_custom_call.1} parent=47 // pred_check_branch
          %1063 = sbr.rel (%p1061) target = $region80
        $region79: #{tpu_custom_call.1} parent=47 // pred_region
          %s1064 = smul.u32 2, %s27
          %1066 = vsyncadd %s1057, 0
          %s1067 = smul.addr %s1064, 8
          %s1068 = scalar_lea.hbm %s7, %s1067
          %s1069 = sshll.u32 %s1060, 4
          %s1070 = int_to_ptr.vmem [resolvable:$true] %s1069
          %s1071 = sshll.u32 %s1068, 4
          %s1072 = int_to_ptr.hbm [resolvable:$true] %s1071
          %1077 = dma.vmem_to_hbm [thread:$0]  %s1070, 256, %s1072, %s1057, 128, 128, 8
        $region80: #{tpu_custom_call.1} parent=47 // pred_fallthru
          _
      $region48: #{tpu_custom_call.1} parent=5 // pred_fallthru
        _
      %p1078 = scmp.le.s32.totalorder 2, %s22
      // Predicated region
      $region81: #{tpu_custom_call.1} parent=5 // pred_check
        %p1079 = pneg %p1078
      $region82: #{tpu_custom_call.1} parent=5 // pred_check_branch
        %1081 = sbr.rel (%p1079) target = $region84
      $region83: #{tpu_custom_call.1} parent=5 // pred_region
        %s1082 = ssub.s32 %s22, 2
        // Predicated region
        $region85: #{tpu_custom_call.1} parent=83 // pred_check
          %p1083 = pneg %p203
        $region86: #{tpu_custom_call.1} parent=83 // pred_check_branch
          %1085 = sbr.rel (%p1083) target = $region88
        $region87: #{tpu_custom_call.1} parent=83 // pred_region
          %s1086 = sand.u32 %s188, 1
          %s1087 = scalar_lea.sflag [#allocation4], %s1086
          %s1088 = sand.u32 %s188, 1
          %s1089 = smul.addr %s1088, 16
          %s1090 = scalar_lea.vmem [#allocation14], %s1089
          %1092 = dma.done %s1087, 256
        $region88: #{tpu_custom_call.1} parent=83 // pred_fallthru
          _
      $region84: #{tpu_custom_call.1} parent=5 // pred_fallthru
        _
    $region6: #{tpu_custom_call.1} parent=1 // loop_footer
      %s26 = sadd.s32 1, %s22
    $region7: #{tpu_custom_call.1} parent=1 // loop_footer_branch
      %21 = sbr.rel target = $region3
    $region8: #{tpu_custom_call.1} parent=1 // loop_exit
      _
    %1093 = vsyncpa [#allocation3], 1
    %s1094 = scalar_lea.sflag [#allocation3], 1
    %1095 = vsyncpa %s1094, 1
    %1096 = vsyncpa [#allocation6], 1
    %1097 = vsyncpa [#allocation9], 1
    %1098 = vsyncpa [#allocation12], 1
    %1099 = vsyncpa [#allocation4], 1
    %s1100 = scalar_lea.sflag [#allocation4], 1
    %1101 = vsyncpa %s1100, 1

</llo_original>
